<compile_context>
chip_gen: v5e
topology: v5e:2x2
jax: 0.10.0
libtpu: 0.0.40
codegen_flags: <defaults>
</compile_context>

<pallas_src>
import functools

import jax
import jax.numpy as jnp
from jax.experimental import pallas as pl
from jax.experimental.pallas import tpu as pltpu


_JNP_FALLBACK_BATCH = 64           # <= this many rows: plain jnp, no kernel
_TM_BUCKETS = (64, 256, 1024, 2048)  # static batch-tile sizes (few recompiles)


def _pick_tm(batch):
    """Largest bucketed tile that still gives >=2 grid steps (v7x dual-TC)
    while amortizing the fixed per-grid-step overhead.  batch > 64 here."""
    target = max(batch // 2, _TM_BUCKETS[0])
    tm = _TM_BUCKETS[0]
    for t in _TM_BUCKETS:
        if t <= target:
            tm = t
    return tm


# ----------------------------- Pallas kernels ------------------------------ #

def _linear_kernel(x_ref, w_ref, b_ref, o_ref):
    """out = x @ W + b (simple_linear branch). bf16 operands, f32 accumulate."""
    xb = x_ref[...].astype(w_ref.dtype)
    acc = jnp.dot(xb, w_ref[...], preferred_element_type=jnp.float32)
    o_ref[...] = (acc + b_ref[...]).astype(o_ref.dtype)


def _mlp_kernel(x_ref, w1_ref, scale_ref, shift_ref, w2_ref, b2_ref, o_ref):
    """out = leaky_relu((x @ W1) * scale + shift) @ W2 + b2.

    b1 and BatchNorm1d (eval) running stats are folded:
        scale = gamma / sqrt(running_var + eps)
        shift = beta - running_mean * scale + b1 * scale
    Dropout(0.2) is identity in eval mode.
    """
    xb = x_ref[...].astype(w1_ref.dtype)
    h = jnp.dot(xb, w1_ref[...], preferred_element_type=jnp.float32)
    h = h * scale_ref[...] + shift_ref[...]
    h = jnp.where(h >= 0.0, h, 0.01 * h)                 # leaky_relu, slope 0.01
    acc = jnp.dot(h.astype(w2_ref.dtype), w2_ref[...],
                  preferred_element_type=jnp.float32)
    o_ref[...] = (acc + b2_ref[...]).astype(o_ref.dtype)


# ------------------------- jitted pallas_call wrappers ---------------------- #

@functools.partial(jax.jit, static_argnames=("tm",))
def _forward_linear(x, w, b, *, tm):
    batch, in_dim = x.shape
    out_dim = w.shape[1]
    grid = (pl.cdiv(batch, tm),)
    return pl.pallas_call(
        _linear_kernel,
        out_shape=jax.ShapeDtypeStruct((batch, out_dim), jnp.float32),
        grid=grid,
        in_specs=[
            pl.BlockSpec((tm, in_dim), lambda i: (i, 0)),        # x: streamed
            pl.BlockSpec((in_dim, out_dim), lambda i: (0, 0)),   # W: resident
            pl.BlockSpec((1, out_dim), lambda i: (0, 0)),        # b: resident
        ],
        out_specs=pl.BlockSpec((tm, out_dim), lambda i: (i, 0)),
        compiler_params=pltpu.CompilerParams(
            dimension_semantics=("parallel",)),
    )(x, w, b)


@functools.partial(jax.jit, static_argnames=("tm",))
def _forward_mlp(x, w1, scale, shift, w2, b2, *, tm):
    batch, in_dim = x.shape
    hid = w1.shape[1]
    out_dim = w2.shape[1]
    grid = (pl.cdiv(batch, tm),)
    return pl.pallas_call(
        _mlp_kernel,
        out_shape=jax.ShapeDtypeStruct((batch, out_dim), jnp.float32),
        grid=grid,
        in_specs=[
            pl.BlockSpec((tm, in_dim), lambda i: (i, 0)),        # x: streamed
            pl.BlockSpec((in_dim, hid), lambda i: (0, 0)),       # W1: resident
            pl.BlockSpec((1, hid), lambda i: (0, 0)),            # bn scale
            pl.BlockSpec((1, hid), lambda i: (0, 0)),            # bn shift (+b1)
            pl.BlockSpec((hid, out_dim), lambda i: (0, 0)),      # W2
            pl.BlockSpec((1, out_dim), lambda i: (0, 0)),        # b2
        ],
        out_specs=pl.BlockSpec((tm, out_dim), lambda i: (i, 0)),
        compiler_params=pltpu.CompilerParams(
            dimension_semantics=("parallel",)),
    )(x, w1, scale, shift, w2, b2)


# ------------------------------- Wrapper ----------------------------------- #

class UncertNetPallas:
    """JAX/Pallas re-implementation of uncert_net's forward pass (eval mode)."""

    def __init__(self, num_kpts, hidden_dim, out_dim, use_confs, use_camID,
                 simple_linear, key):
        self.simple_linear = simple_linear
        in_dim = num_kpts * 3
        if use_confs:
            in_dim += num_kpts
        if use_camID:
            in_dim += 1
        self.in_dim = in_dim
        self.hidden_dim = hidden_dim
        self.out_dim = out_dim

        ks = jax.random.split(key, 10)
        f32 = jnp.float32
        bf16 = jnp.bfloat16

        # ---- raw f32 parameters (mirror the PyTorch module, stored (in,out))
        self.w_lin = (jax.random.normal(ks[0], (in_dim, out_dim), f32)
                      / jnp.sqrt(in_dim))
        self.b_lin = jax.random.normal(ks[1], (1, out_dim), f32) * 0.01

        self.w1 = (jax.random.normal(ks[2], (in_dim, hidden_dim), f32)
                   / jnp.sqrt(in_dim))
        self.b1 = jax.random.normal(ks[3], (1, hidden_dim), f32) * 0.01

        gamma = 1.0 + 0.1 * jax.random.normal(ks[4], (hidden_dim,), f32)
        beta = 0.1 * jax.random.normal(ks[5], (hidden_dim,), f32)
        running_mean = 0.1 * jax.random.normal(ks[6], (hidden_dim,), f32)
        running_var = jnp.abs(jax.random.normal(ks[7], (hidden_dim,), f32)) + 0.5
        eps = 1e-5
        scale = gamma / jnp.sqrt(running_var + eps)
        shift = beta - running_mean * scale
        self.bn_scale = scale.reshape(1, hidden_dim)
        self.bn_shift = shift.reshape(1, hidden_dim)

        self.w2 = (jax.random.normal(ks[8], (hidden_dim, out_dim), f32)
                   / jnp.sqrt(hidden_dim))
        self.b2 = jax.random.normal(ks[9], (1, out_dim), f32) * 0.01

        # ---- kernel operands (natural shapes; bf16 matmul weights, folded b1)
        self.k_w_lin = self.w_lin.astype(bf16)
        self.k_b_lin = self.b_lin
        self.k_w1 = self.w1.astype(bf16)
        self.k_scale = self.bn_scale
        self.k_shift = self.bn_shift + self.b1 * self.bn_scale  # fold b1 into BN
        self.k_w2 = self.w2.astype(bf16)
        self.k_b2 = self.b2

    # -- plain-jnp path used for tiny batches (pure launch latency otherwise);
    #    mirrors the kernel numerics exactly -------------------------------- #
    def _jnp_forward(self, x):
        xb = x.astype(jnp.bfloat16)
        if self.simple_linear:
            acc = jnp.dot(xb, self.k_w_lin, preferred_element_type=jnp.float32)
            return acc + self.k_b_lin
        h = jnp.dot(xb, self.k_w1, preferred_element_type=jnp.float32)
        h = h * self.k_scale + self.k_shift
        h = jnp.where(h >= 0.0, h, 0.01 * h)
        acc = jnp.dot(h.astype(jnp.bfloat16), self.k_w2,
                      preferred_element_type=jnp.float32)
        return acc + self.k_b2

    def __call__(self, x):
        batch = x.shape[0]
        if batch <= _JNP_FALLBACK_BATCH:
            # Few-KFLOP regime: let XLA fuse it (ideally into x's producer).
            return self._jnp_forward(x)
        tm = _pick_tm(batch)
        if self.simple_linear:
            return _forward_linear(x, self.k_w_lin, self.k_b_lin, tm=tm)
        return _forward_mlp(x, self.k_w1, self.k_scale, self.k_shift,
                            self.k_w2, self.k_b2, tm=tm)

    # -- pure-JAX reference mirroring kernel numerics (bf16 matmul operands,
    #    f32 accumulation / epilogue) for correctness checking ---------------
    def reference(self, x):
        bf16 = jnp.bfloat16
        xb = x.astype(bf16)
        if self.simple_linear:
            acc = jnp.dot(xb, self.w_lin.astype(bf16),
                          preferred_element_type=jnp.float32)
            return acc + self.b_lin
        h = jnp.dot(xb, self.w1.astype(bf16),
                    preferred_element_type=jnp.float32)
        h = h * self.bn_scale + (self.bn_shift + self.b1 * self.bn_scale)
        h = jnp.where(h >= 0.0, h, 0.01 * h)
        acc = jnp.dot(h.astype(bf16), self.w2.astype(bf16),
                      preferred_element_type=jnp.float32)
        return acc + self.b2


# --------------------------------- Main ------------------------------------ #

if __name__ == "__main__":
    key = jax.random.PRNGKey(0)
    k_param, k_x_small, k_x_big = jax.random.split(key, 3)

    # small config consistent with the module's __init__
    num_kpts = 17
    hidden_dim = 32
    out_dim = 1
    use_confs = True
    use_camID = True

    # ---- full MLP path (simple_linear=False) through Pallas:
    #      batch=600, tm=256 -> grid of 3 steps with a ragged last block.
    net = UncertNetPallas(num_kpts, hidden_dim, out_dim, use_confs, use_camID,
                          simple_linear=False, key=k_param)
    x_big = jax.random.normal(k_x_big, (600, net.in_dim), jnp.float32)
    out_big = net(x_big)
    jax.block_until_ready(out_big)
    ref_big = net.reference(x_big)
    assert out_big.shape == (600, out_dim)
    assert jnp.allclose(out_big, ref_big, atol=1e-3, rtol=1e-3), \
        "MLP Pallas path mismatch"

    # ---- tiny batch -> jnp fallback path (same numerics) ----
    x_small = jax.random.normal(k_x_small, (8, net.in_dim), jnp.float32)
    out_small = net(x_small)
    jax.block_until_ready(out_small)
    assert out_small.shape == (8, out_dim)
    assert jnp.allclose(out_small, net.reference(x_small),
                        atol=1e-3, rtol=1e-3), "tiny-batch fallback mismatch"

    # ---- simple_linear=True path through Pallas ----
    net_lin = UncertNetPallas(num_kpts, hidden_dim, out_dim, use_confs,
                              use_camID, simple_linear=True, key=k_param)
    out_lin = net_lin(x_big)
    jax.block_until_ready(out_lin)
    ref_lin = net_lin.reference(x_big)
    assert out_lin.shape == (600, out_dim)
    assert jnp.allclose(out_lin, ref_lin, atol=1e-3, rtol=1e-3), \
        "linear Pallas path mismatch"

    print("KERNEL_OK")
</pallas_src>

<mosaic_0001>
module attributes {stable_mosaic.version = 11 : i64} {
  func.func @_mlp_kernel(%arg0: i32, %arg1: memref<256x69xf32, #tpu.memory_space<vmem>>, %arg2: memref<69x32xbf16, #tpu.memory_space<vmem>>, %arg3: memref<1x32xf32, #tpu.memory_space<vmem>>, %arg4: memref<1x32xf32, #tpu.memory_space<vmem>>, %arg5: memref<32x1xbf16, #tpu.memory_space<vmem>>, %arg6: memref<1x1xf32, #tpu.memory_space<vmem>>, %arg7: memref<256x1xf32, #tpu.memory_space<vmem>>) attributes {dimension_semantics = [#tpu.dimension_semantics<parallel>], iteration_bounds = array<i64: 3>, scalar_prefetch = 0 : i64, scratch_operands = 0 : i64, tpu.core_type = #tpu.core_type<tc>, window_params = [{transform_indices = @transform_0, window_bounds = array<i64: 256, 69>}, {pipeline_mode = #tpu.pipeline_mode<synchronous>, transform_indices = @transform_1, window_bounds = array<i64: 69, 32>}, {pipeline_mode = #tpu.pipeline_mode<synchronous>, transform_indices = @transform_2, window_bounds = array<i64: 1, 32>}, {pipeline_mode = #tpu.pipeline_mode<synchronous>, transform_indices = @transform_3, window_bounds = array<i64: 1, 32>}, {pipeline_mode = #tpu.pipeline_mode<synchronous>, transform_indices = @transform_4, window_bounds = array<i64: 32, 1>}, {pipeline_mode = #tpu.pipeline_mode<synchronous>, transform_indices = @transform_5, window_bounds = array<i64: 1, 1>}, {transform_indices = @transform_6, window_bounds = array<i64: 256, 1>}]} {
    %c0 = arith.constant 0 : index
    %c0_0 = arith.constant 0 : index
    %0 = vector.load %arg1[%c0, %c0_0] : memref<256x69xf32, #tpu.memory_space<vmem>>, vector<256x69xf32>
    %1 = arith.truncf %0 : vector<256x69xf32> to vector<256x69xbf16>
    %c0_1 = arith.constant 0 : index
    %c0_2 = arith.constant 0 : index
    %2 = vector.load %arg2[%c0_1, %c0_2] : memref<69x32xbf16, #tpu.memory_space<vmem>>, vector<69x32xbf16>
    %cst = arith.constant dense<0.000000e+00> : vector<256x32xf32>
    %3 = tpu.matmul %1, %2, %cst {dimension_numbers = #tpu.dot_dimension_numbers<[1], [0], [0], [1], [0, 0, 1, 1], [], []>} : vector<256x69xbf16>, vector<69x32xbf16>, vector<256x32xf32> -> vector<256x32xf32>
    %c0_3 = arith.constant 0 : index
    %c0_4 = arith.constant 0 : index
    %4 = vector.load %arg3[%c0_3, %c0_4] : memref<1x32xf32, #tpu.memory_space<vmem>>, vector<1x32xf32>
    %5 = vector.broadcast %4 : vector<1x32xf32> to vector<256x32xf32>
    %6 = arith.mulf %3, %5 : vector<256x32xf32>
    %c0_5 = arith.constant 0 : index
    %c0_6 = arith.constant 0 : index
    %7 = vector.load %arg4[%c0_5, %c0_6] : memref<1x32xf32, #tpu.memory_space<vmem>>, vector<1x32xf32>
    %8 = vector.broadcast %7 : vector<1x32xf32> to vector<256x32xf32>
    %9 = arith.addf %6, %8 : vector<256x32xf32>
    %cst_7 = arith.constant 0.000000e+00 : f32
    %10 = vector.broadcast %cst_7 : f32 to vector<256x32xf32>
    %11 = arith.cmpf oge, %9, %10 : vector<256x32xf32>
    %cst_8 = arith.constant 0.00999999977 : f32
    %12 = vector.broadcast %cst_8 : f32 to vector<256x32xf32>
    %13 = arith.mulf %12, %9 : vector<256x32xf32>
    %14 = arith.select %11, %9, %13 : vector<256x32xi1>, vector<256x32xf32>
    %15 = arith.truncf %14 : vector<256x32xf32> to vector<256x32xbf16>
    %c0_9 = arith.constant 0 : index
    %c0_10 = arith.constant 0 : index
    %16 = vector.load %arg5[%c0_9, %c0_10] : memref<32x1xbf16, #tpu.memory_space<vmem>>, vector<32x1xbf16>
    %cst_11 = arith.constant dense<0.000000e+00> : vector<256x1xf32>
    %17 = tpu.matmul %15, %16, %cst_11 {dimension_numbers = #tpu.dot_dimension_numbers<[1], [0], [0], [1], [0, 0, 1, 1], [], []>} : vector<256x32xbf16>, vector<32x1xbf16>, vector<256x1xf32> -> vector<256x1xf32>
    %c0_12 = arith.constant 0 : index
    %c0_13 = arith.constant 0 : index
    %18 = vector.load %arg6[%c0_12, %c0_13] : memref<1x1xf32, #tpu.memory_space<vmem>>, vector<1x1xf32>
    %19 = vector.broadcast %18 : vector<1x1xf32> to vector<256x1xf32>
    %20 = arith.addf %17, %19 : vector<256x1xf32>
    %c0_14 = arith.constant 0 : index
    %c0_15 = arith.constant 0 : index
    %21 = vector.load %arg7[%c0_14, %c0_15] : memref<256x1xf32, #tpu.memory_space<vmem>>, vector<256x1xf32>
    tpu.vector_store %arg7[%c0_14, %c0_15], %20 {strides = array<i32>} : memref<256x1xf32, #tpu.memory_space<vmem>>, vector<256x1xf32>,
    return
  }
  func.func @transform_0(%arg0: i32) -> (i32, i32) {
    %c0_i32 = arith.constant 0 : i32
    %c0_i32_0 = arith.constant 0 : i32
    return %arg0, %c0_i32 : i32, i32
  }
  func.func @transform_1(%arg0: i32) -> (i32, i32) {
    %c0_i32 = arith.constant 0 : i32
    %c0_i32_0 = arith.constant 0 : i32
    %c0_i32_1 = arith.constant 0 : i32
    return %c0_i32, %c0_i32_0 : i32, i32
  }
  func.func @transform_2(%arg0: i32) -> (i32, i32) {
    %c0_i32 = arith.constant 0 : i32
    %c0_i32_0 = arith.constant 0 : i32
    %c0_i32_1 = arith.constant 0 : i32
    return %c0_i32, %c0_i32_0 : i32, i32
  }
  func.func @transform_3(%arg0: i32) -> (i32, i32) {
    %c0_i32 = arith.constant 0 : i32
    %c0_i32_0 = arith.constant 0 : i32
    %c0_i32_1 = arith.constant 0 : i32
    return %c0_i32, %c0_i32_0 : i32, i32
  }
  func.func @transform_4(%arg0: i32) -> (i32, i32) {
    %c0_i32 = arith.constant 0 : i32
    %c0_i32_0 = arith.constant 0 : i32
    %c0_i32_1 = arith.constant 0 : i32
    return %c0_i32, %c0_i32_0 : i32, i32
  }
  func.func @transform_5(%arg0: i32) -> (i32, i32) {
    %c0_i32 = arith.constant 0 : i32
    %c0_i32_0 = arith.constant 0 : i32
    %c0_i32_1 = arith.constant 0 : i32
    return %c0_i32, %c0_i32_0 : i32, i32
  }
  func.func @transform_6(%arg0: i32) -> (i32, i32) {
    %c0_i32 = arith.constant 0 : i32
    %c0_i32_0 = arith.constant 0 : i32
    return %arg0, %c0_i32 : i32, i32
  }
}

</mosaic_0001>

<llo_original>
// kernel: _forward_mlp.1
$region0: #{_forward_mlp.1}
  #allocation0 [shape = 'u32[]', space=smem, size = 0x4, offset = 0x4, fixed_abs, tag = 'smem constant byte address 0x4 - core index']
  #allocation1 [shape = 'u32[72,128]{1,0:T(1,128)}', space=vmem, size = 0x9000, scoped, tag = 'internal scratch']
  #allocation2 [shape = 'f32[1,1]{1,0:T(1,128)S(1)}', space=vmem, size = 0x200, scoped, tag = 'scoped memory for _forward_mlp.1']
  %s0 = inlined_call_operand.vmem [shape: f32[600,69], index: 0, kind: input, shape index: {}]
  %s1 = inlined_call_operand.vmem [shape: bf16[69,32], index: 1, kind: input, shape index: {}]
  %s2 = inlined_call_operand.vmem [shape: f32[1,32], index: 2, kind: input, shape index: {}]
  %s3 = inlined_call_operand.vmem [shape: f32[1,32], index: 3, kind: input, shape index: {}]
  %s4 = inlined_call_operand.vmem [shape: bf16[32,1], index: 4, kind: input, shape index: {}]
  %s5 = inlined_call_operand.<no memory space> [shape: f32[1,1], index: 5, kind: input, shape index: {}]
  %s6 = inlined_call_operand.vmem [shape: f32[600,1], index: 6, kind: output, shape index: {}]
  %s7 = sld [smem:[#allocation0]]
  $region105: #{_forward_mlp.1} parent=0
    _
  %s9 = ssub.s32 1, %s7
  %s10 = scalar_select 0, %s9, %s7
  %v11 = vstv %s5
  %12 = vst [vmem:[#allocation2] sm:$0x1] %v11
  $region1: #{_forward_mlp.1} parent=0
    #allocation3 [shape = 'u8[262144]{0}', space=vmem, size = 0x40000, scoped, tag = 'output window, operand 0']
    loop: start=0, step=1, limit=5
    $region2: #{_forward_mlp.1} parent=1 // loop_pre_header
      _
    $region3: #{_forward_mlp.1} parent=1 // loop_header
      %s14 = sphi 0, %s18
      %p15 = scmp.ge.s32.totalorder %s14, 5
      %s24 = sphi 0, %s26
      %s27 = sphi 0, %s24
      %s28 = sphi 0, %s27
      %s44 = sphi 0, %s28
      %s48 = sphi 0, %s48
      %s50 = sphi 0, %s48
      %s51 = sphi 0, %s50
      %s65 = sphi 0, %s51
      %s69 = sphi 0, %s69
      %s71 = sphi 0, %s69
      %s72 = sphi 0, %s71
      %s86 = sphi 0, %s72
      %s90 = sphi 0, %s90
      %s92 = sphi 0, %s90
      %s93 = sphi 0, %s92
      %s107 = sphi 0, %s93
      %s111 = sphi 0, %s111
      %s113 = sphi 0, %s111
      %s114 = sphi 0, %s113
      %s128 = sphi 0, %s114
      %s132 = sphi 0, %s132
      %s134 = sphi 0, %s132
      %s135 = sphi 0, %s134
      %s149 = sphi 0, %s135
      %s155 = sphi 0, %s157
      %s158 = sphi 0, %s155
      %s159 = sphi 0, %s158
      %s175 = sphi 0, %s159
    $region4: #{_forward_mlp.1} parent=1 // loop_header_branch
      %17 = sbr.rel (%p15) target = $region8
    $region5: #{_forward_mlp.1} parent=1 // loop_body
      %s19 = ssub.s32 %s14, 1
      %s20 = ssub.s32 %s14, 2
      %s21 = sadd.s32 %s14, 1
      %s22 = ssub.s32 %s14, %s21
      %p23 = scmp.eq.s32.totalorder %s22, 0
      %s25 = sadd.s32 %s24, 1
      %s26 = scalar_select %p23, %s24, %s25
      %p29 = pneg %p23
      %p30 = scmp.eq.s32.totalorder %s14, 2
      %p31 = por %p29, %p30
      %p32 = scmp.ne.s32.totalorder %s24, %s27
      %p33 = scmp.eq.s32.totalorder %s14, 0
      %p34 = por %p32, %p33
      %p35 = scmp.ne.s32.totalorder %s24, %s27
      %p36 = scmp.eq.s32.totalorder %s19, 2
      %p37 = por %p35, %p36
      %p38 = scmp.ne.s32.totalorder %s27, %s28
      %p39 = scmp.eq.s32.totalorder %s19, 0
      %p40 = por %p38, %p39
      %p41 = scmp.ne.s32.totalorder %s27, %s28
      %p42 = scmp.eq.s32.totalorder %s20, 2
      %p43 = por %p41, %p42
      %p45 = scmp.ne.s32.totalorder %s28, %s44
      %p46 = scmp.eq.s32.totalorder %s20, 0
      %p47 = por %p45, %p46
      %s49 = sadd.s32 %s48, 1
      %p52 = scmp.eq.s32.totalorder %s14, 2
      %p53 = scmp.ne.s32.totalorder %s48, %s50
      %p54 = scmp.eq.s32.totalorder %s14, 0
      %p55 = por %p53, %p54
      %p56 = scmp.ne.s32.totalorder %s48, %s50
      %p57 = scmp.eq.s32.totalorder %s19, 2
      %p58 = por %p56, %p57
      %p59 = scmp.ne.s32.totalorder %s50, %s51
      %p60 = scmp.eq.s32.totalorder %s19, 0
      %p61 = por %p59, %p60
      %p62 = scmp.ne.s32.totalorder %s50, %s51
      %p63 = scmp.eq.s32.totalorder %s20, 2
      %p64 = por %p62, %p63
      %p66 = scmp.ne.s32.totalorder %s51, %s65
      %p67 = scmp.eq.s32.totalorder %s20, 0
      %p68 = por %p66, %p67
      %s70 = sadd.s32 %s69, 1
      %p73 = scmp.eq.s32.totalorder %s14, 2
      %p74 = scmp.ne.s32.totalorder %s69, %s71
      %p75 = scmp.eq.s32.totalorder %s14, 0
      %p76 = por %p74, %p75
      %p77 = scmp.ne.s32.totalorder %s69, %s71
      %p78 = scmp.eq.s32.totalorder %s19, 2
      %p79 = por %p77, %p78
      %p80 = scmp.ne.s32.totalorder %s71, %s72
      %p81 = scmp.eq.s32.totalorder %s19, 0
      %p82 = por %p80, %p81
      %p83 = scmp.ne.s32.totalorder %s71, %s72
      %p84 = scmp.eq.s32.totalorder %s20, 2
      %p85 = por %p83, %p84
      %p87 = scmp.ne.s32.totalorder %s72, %s86
      %p88 = scmp.eq.s32.totalorder %s20, 0
      %p89 = por %p87, %p88
      %s91 = sadd.s32 %s90, 1
      %p94 = scmp.eq.s32.totalorder %s14, 2
      %p95 = scmp.ne.s32.totalorder %s90, %s92
      %p96 = scmp.eq.s32.totalorder %s14, 0
      %p97 = por %p95, %p96
      %p98 = scmp.ne.s32.totalorder %s90, %s92
      %p99 = scmp.eq.s32.totalorder %s19, 2
      %p100 = por %p98, %p99
      %p101 = scmp.ne.s32.totalorder %s92, %s93
      %p102 = scmp.eq.s32.totalorder %s19, 0
      %p103 = por %p101, %p102
      %p104 = scmp.ne.s32.totalorder %s92, %s93
      %p105 = scmp.eq.s32.totalorder %s20, 2
      %p106 = por %p104, %p105
      %p108 = scmp.ne.s32.totalorder %s93, %s107
      %p109 = scmp.eq.s32.totalorder %s20, 0
      %p110 = por %p108, %p109
      %s112 = sadd.s32 %s111, 1
      %p115 = scmp.eq.s32.totalorder %s14, 2
      %p116 = scmp.ne.s32.totalorder %s111, %s113
      %p117 = scmp.eq.s32.totalorder %s14, 0
      %p118 = por %p116, %p117
      %p119 = scmp.ne.s32.totalorder %s111, %s113
      %p120 = scmp.eq.s32.totalorder %s19, 2
      %p121 = por %p119, %p120
      %p122 = scmp.ne.s32.totalorder %s113, %s114
      %p123 = scmp.eq.s32.totalorder %s19, 0
      %p124 = por %p122, %p123
      %p125 = scmp.ne.s32.totalorder %s113, %s114
      %p126 = scmp.eq.s32.totalorder %s20, 2
      %p127 = por %p125, %p126
      %p129 = scmp.ne.s32.totalorder %s114, %s128
      %p130 = scmp.eq.s32.totalorder %s20, 0
      %p131 = por %p129, %p130
      %s133 = sadd.s32 %s132, 1
      %p136 = scmp.eq.s32.totalorder %s14, 2
      %p137 = scmp.ne.s32.totalorder %s132, %s134
      %p138 = scmp.eq.s32.totalorder %s14, 0
      %p139 = por %p137, %p138
      %p140 = scmp.ne.s32.totalorder %s132, %s134
      %p141 = scmp.eq.s32.totalorder %s19, 2
      %p142 = por %p140, %p141
      %p143 = scmp.ne.s32.totalorder %s134, %s135
      %p144 = scmp.eq.s32.totalorder %s19, 0
      %p145 = por %p143, %p144
      %p146 = scmp.ne.s32.totalorder %s134, %s135
      %p147 = scmp.eq.s32.totalorder %s20, 2
      %p148 = por %p146, %p147
      %p150 = scmp.ne.s32.totalorder %s135, %s149
      %p151 = scmp.eq.s32.totalorder %s20, 0
      %p152 = por %p150, %p151
      %s153 = ssub.s32 %s14, %s21
      %p154 = scmp.eq.s32.totalorder %s153, 0
      %s156 = sadd.s32 %s155, 1
      %s157 = scalar_select %p154, %s155, %s156
      %p160 = pneg %p154
      %p161 = scmp.eq.s32.totalorder %s14, 2
      %p162 = por %p160, %p161
      %p163 = scmp.ne.s32.totalorder %s155, %s158
      %p164 = scmp.eq.s32.totalorder %s14, 0
      %p165 = por %p163, %p164
      %p166 = scmp.ne.s32.totalorder %s155, %s158
      %p167 = scmp.eq.s32.totalorder %s19, 2
      %p168 = por %p166, %p167
      %p169 = scmp.ne.s32.totalorder %s158, %s159
      %p170 = scmp.eq.s32.totalorder %s19, 0
      %p171 = por %p169, %p170
      %p172 = scmp.ne.s32.totalorder %s158, %s159
      %p173 = scmp.eq.s32.totalorder %s20, 2
      %p174 = por %p172, %p173
      %p176 = scmp.ne.s32.totalorder %s159, %s175
      %p177 = scmp.eq.s32.totalorder %s20, 0
      %p178 = por %p176, %p177
      %p179 = scmp.le.s32.totalorder 1, %s14
      %p180 = scmp.lt.s32.totalorder %s14, 4
      %p181 = pnand %p179, %p180
      %p182 = pneg %p181
      // Predicated region
      $region9: #{_forward_mlp.1} parent=5 // pred_check
        _
      $region10: #{_forward_mlp.1} parent=5 // pred_check_branch
        %184 = sbr.rel (%p181) target = $region12
      $region11: #{_forward_mlp.1} parent=5 // pred_region
        %s185 = ssub.s32 %s14, 1
        // Predicated region
        $region13: #{_forward_mlp.1} parent=11 // pred_check
          %p186 = pneg %p61
        $region14: #{_forward_mlp.1} parent=11 // pred_check_branch
          %188 = sbr.rel (%p186) target = $region16
        $region15: #{_forward_mlp.1} parent=11 // pred_region
          _
        $region16: #{_forward_mlp.1} parent=11 // pred_fallthru
          _
        // Predicated region
        $region17: #{_forward_mlp.1} parent=11 // pred_check
          %p189 = pneg %p82
        $region18: #{_forward_mlp.1} parent=11 // pred_check_branch
          %191 = sbr.rel (%p189) target = $region20
        $region19: #{_forward_mlp.1} parent=11 // pred_region
          _
        $region20: #{_forward_mlp.1} parent=11 // pred_fallthru
          _
        // Predicated region
        $region21: #{_forward_mlp.1} parent=11 // pred_check
          %p192 = pneg %p103
        $region22: #{_forward_mlp.1} parent=11 // pred_check_branch
          %194 = sbr.rel (%p192) target = $region24
        $region23: #{_forward_mlp.1} parent=11 // pred_region
          _
        $region24: #{_forward_mlp.1} parent=11 // pred_fallthru
          _
        // Predicated region
        $region25: #{_forward_mlp.1} parent=11 // pred_check
          %p195 = pneg %p124
        $region26: #{_forward_mlp.1} parent=11 // pred_check_branch
          %197 = sbr.rel (%p195) target = $region28
        $region27: #{_forward_mlp.1} parent=11 // pred_region
          _
        $region28: #{_forward_mlp.1} parent=11 // pred_fallthru
          _
        // Predicated region
        $region29: #{_forward_mlp.1} parent=11 // pred_check
          %p198 = pneg %p145
        $region30: #{_forward_mlp.1} parent=11 // pred_check_branch
          %200 = sbr.rel (%p198) target = $region32
        $region31: #{_forward_mlp.1} parent=11 // pred_region
          _
        $region32: #{_forward_mlp.1} parent=11 // pred_fallthru
          _
      $region12: #{_forward_mlp.1} parent=5 // pred_fallthru
        _
      %p201 = scmp.lt.s32.totalorder %s14, 3
      // Predicated region
      $region33: #{_forward_mlp.1} parent=5 // pred_check
        %p202 = pneg %p201
      $region34: #{_forward_mlp.1} parent=5 // pred_check_branch
        %204 = sbr.rel (%p202) target = $region36
      $region35: #{_forward_mlp.1} parent=5 // pred_region
        // Predicated region
        $region37: #{_forward_mlp.1} parent=35 // pred_check
          %p205 = pneg %p34
        $region38: #{_forward_mlp.1} parent=35 // pred_check_branch
          %207 = sbr.rel (%p205) target = $region40
        $region39: #{_forward_mlp.1} parent=35 // pred_region
          %s208 = smul.u32 32, %s14
          %s209 = ssub.s32 75, %s208
          %p210 = scmp.lt.s32.totalorder %s209, 32
          %s211 = scalar_select %p210, %s209, 32
          %s212 = smul.u32 8, %s211
          %p213 = scmp.lt.s32.totalorder %s208, 74
          %s214 = scalar_select %p213, %s208, 74
          %s215 = smul.addr %s214, 8
          %s216 = scalar_lea.vmem %s0, %s215
          %s217 = smul.u32 32, %s14
          %s218 = ssub.s32 75, %s217
          %p219 = scmp.lt.s32.totalorder %s218, 32
          %s220 = scalar_select %p219, %s218, 32
          %s221 = smul.u32 8, %s220
        $region40: #{_forward_mlp.1} parent=35 // pred_fallthru
          _
      $region36: #{_forward_mlp.1} parent=5 // pred_fallthru
        _
      %p222 = scmp.le.s32.totalorder 1, %s14
      %p223 = scmp.lt.s32.totalorder %s14, 4
      %p224 = pnand %p222, %p223
      %p225 = pneg %p224
      // Predicated region
      $region41: #{_forward_mlp.1} parent=5 // pred_check
        _
      $region42: #{_forward_mlp.1} parent=5 // pred_check_branch
        %227 = sbr.rel (%p224) target = $region44
      $region43: #{_forward_mlp.1} parent=5 // pred_region
        %s228 = ssub.s32 %s14, 1
        %s229 = smul.u32 32, %s19
        %s230 = ssub.s32 75, %s229
        %p231 = scmp.lt.s32.totalorder %s230, 32
        %s232 = scalar_select %p231, %s230, 32
        %s233 = smul.u32 8, %s232
        %p234 = scmp.lt.s32.totalorder %s229, 74
        %s235 = scalar_select %p234, %s229, 74
        %s236 = smul.addr %s235, 8
        %s237 = scalar_lea.vmem %s0, %s236
        %p238 = pneg %p40
        %p239 = pneg %p37
        %p240 = pneg %p61
        %p241 = pneg %p58
        %p242 = pneg %p82
        %p243 = pneg %p79
        %p244 = pneg %p103
        %p245 = pneg %p100
        %p246 = pneg %p124
        %p247 = pneg %p121
        %p248 = pneg %p145
        %p249 = pneg %p142
        %p250 = pneg %p171
        %p251 = pneg %p168
        %s252 = sand.u32 %s158, 1
        %s253 = sand.u32 %s158, 1
        %s254 = smul.addr %s253, 256
        %s255 = scalar_lea.vmem [#allocation3], %s254
        %s256 = smul.u32 32, %s19
        %s257 = ssub.s32 75, %s256
        %p258 = scmp.lt.s32.totalorder %s257, 32
        %s259 = scalar_select %p258, %s257, 32
        %s260 = smul.u32 8, %s259
        %p261 = scmp.lt.s32.totalorder %s256, 74
        %s262 = scalar_select %p261, %s256, 74
        %s263 = smul.addr %s262, 8
        %s264 = scalar_lea.vmem %s0, %s263
        %s265 = smul.u32 32, %s19
        %s266 = ssub.s32 75, %s265
        %p267 = scmp.lt.s32.totalorder %s266, 32
        %s268 = scalar_select %p267, %s266, 32
        %s269 = smul.u32 8, %s268
        %s270 = smul.u32 32, %s19
        %s271 = ssub.s32 75, %s270
        %p272 = scmp.lt.s32.totalorder %s271, 32
        %s273 = scalar_select %p272, %s271, 32
        %s274 = smul.u32 8, %s273
        %v276 = vld [vmem:[%s264] sm:$0xff]
        %v277 = vld [vmem:[%s264 + $0x8] sm:$0xff]
        %v278 = vld [vmem:[%s264 + $0x10] sm:$0xff]
        %v279 = vld [vmem:[%s264 + $0x18] sm:$0xff]
        %v280 = vld [vmem:[%s264 + $0x20] sm:$0xff]
        %v281 = vld [vmem:[%s264 + $0x28] sm:$0xff]
        %v282 = vld [vmem:[%s264 + $0x30] sm:$0xff]
        %v283 = vld [vmem:[%s264 + $0x38] sm:$0xff]
        %v284 = vld [vmem:[%s264 + $0x40] sm:$0xff]
        %v285 = vld [vmem:[%s264 + $0x48] sm:$0xff]
        %v286 = vld [vmem:[%s264 + $0x50] sm:$0xff]
        %v287 = vld [vmem:[%s264 + $0x58] sm:$0xff]
        %v288 = vld [vmem:[%s264 + $0x60] sm:$0xff]
        %v289 = vld [vmem:[%s264 + $0x68] sm:$0xff]
        %v290 = vld [vmem:[%s264 + $0x70] sm:$0xff]
        %v291 = vld [vmem:[%s264 + $0x78] sm:$0xff]
        %v292 = vld [vmem:[%s264 + $0x80] sm:$0xff]
        %v293 = vld [vmem:[%s264 + $0x88] sm:$0xff]
        %v294 = vld [vmem:[%s264 + $0x90] sm:$0xff]
        %v295 = vld [vmem:[%s264 + $0x98] sm:$0xff]
        %v296 = vld [vmem:[%s264 + $0xa0] sm:$0xff]
        %v297 = vld [vmem:[%s264 + $0xa8] sm:$0xff]
        %v298 = vld [vmem:[%s264 + $0xb0] sm:$0xff]
        %v299 = vld [vmem:[%s264 + $0xb8] sm:$0xff]
        %v300 = vld [vmem:[%s264 + $0xc0] sm:$0xff]
        %v301 = vld [vmem:[%s264 + $0xc8] sm:$0xff]
        %v302 = vld [vmem:[%s264 + $0xd0] sm:$0xff]
        %v303 = vld [vmem:[%s264 + $0xd8] sm:$0xff]
        %v304 = vld [vmem:[%s264 + $0xe0] sm:$0xff]
        %v305 = vld [vmem:[%s264 + $0xe8] sm:$0xff]
        %v306 = vld [vmem:[%s264 + $0xf0] sm:$0xff]
        %v307 = vld [vmem:[%s264 + $0xf8] sm:$0xff]
        %v308 = vpack.c.bf16 %v277, %v276
        %v309 = vpack.c.bf16 %v279, %v278
        %v310 = vpack.c.bf16 %v281, %v280
        %v311 = vpack.c.bf16 %v283, %v282
        %v312 = vpack.c.bf16 %v285, %v284
        %v313 = vpack.c.bf16 %v287, %v286
        %v314 = vpack.c.bf16 %v289, %v288
        %v315 = vpack.c.bf16 %v291, %v290
        %v316 = vpack.c.bf16 %v293, %v292
        %v317 = vpack.c.bf16 %v295, %v294
        %v318 = vpack.c.bf16 %v297, %v296
        %v319 = vpack.c.bf16 %v299, %v298
        %v320 = vpack.c.bf16 %v301, %v300
        %v321 = vpack.c.bf16 %v303, %v302
        %v322 = vpack.c.bf16 %v305, %v304
        %v323 = vpack.c.bf16 %v307, %v306
        %v324 = vld [vmem:[%s1] sm:$0xf]
        %v325 = vld [vmem:[%s1 + $0x4] sm:$0xf]
        %v326 = vld [vmem:[%s1 + $0x8] sm:$0xf]
        %v327 = vld [vmem:[%s1 + $0xc] sm:$0xf]
        %v328 = vld [vmem:[%s1 + $0x10] sm:$0xf]
        %v329 = vld [vmem:[%s1 + $0x14] sm:$0xf]
        %v330 = vld [vmem:[%s1 + $0x18] sm:$0xf]
        %v331 = vld [vmem:[%s1 + $0x1c] sm:$0xf]
        %v332 = vld [vmem:[%s1 + $0x20] sm:$0x7]
        %v342 = vunpack.c.l.b16 %v324
        %v343 = vunpack.c.l.b16 %v325
        %v344 = vunpack.c.l.b16 %v326
        %v345 = vunpack.c.l.b16 %v327
        %v346 = vunpack.c.l.b16 %v328
        %v347 = vunpack.c.l.b16 %v329
        %v348 = vunpack.c.l.b16 %v330
        %v349 = vunpack.c.l.b16 %v331
        %v350 = vunpack.c.l.b16 %v332
        %v351 = vpack.c.b16 %v343, %v342
        %v352 = vpack.c.b16 %v345, %v344
        %v353 = vpack.c.b16 %v347, %v346
        %v354 = vpack.c.b16 %v349, %v348
        %v355 = vpack.c.b16 %v350, %v350
        %vm360 = vcmask 564224
        %v362 = vsel %vm360, %v308, 0
        %v365 = vsel %vm360, %v309, 0
        %v368 = vsel %vm360, %v310, 0
        %v371 = vsel %vm360, %v311, 0
        %v374 = vsel %vm360, %v312, 0
        %v377 = vsel %vm360, %v313, 0
        %v380 = vsel %vm360, %v314, 0
        %v383 = vsel %vm360, %v315, 0
        %v386 = vsel %vm360, %v316, 0
        %v389 = vsel %vm360, %v317, 0
        %v392 = vsel %vm360, %v318, 0
        %v395 = vsel %vm360, %v319, 0
        %v398 = vsel %vm360, %v320, 0
        %v401 = vsel %vm360, %v321, 0
        %v404 = vsel %vm360, %v322, 0
        %v407 = vsel %vm360, %v323, 0
        %vm409 = vcmask 1041408
        %vm410 = vcmask 1042432
        %v411 = vsel %vm409, 4294967295, 65535
        %v412 = vsel %vm410, %v411, 0
        %v414 = vand.u32 %v355, %v412
        %416 = vmatpush.bf16.msra.mxu0 0
        %417 = vmatpush.bf16.msra.mxu0 0
        %418 = vmatpush.bf16.msra.mxu0 0
        %419 = vmatpush.bf16.msra.mxu0 %v414
        %420 = vmatpush.bf16.msra.mxu0 %v354
        %421 = vmatpush.bf16.msra.mxu0 %v353
        %422 = vmatpush.bf16.msra.mxu0 %v352
        %423 = vmatpush.bf16.msra.mxu0 %v351
        %424 = vmatmul.bf16.gmra.mxu0 %v362
        %v425 = vpop.f32.mrf.mxu0
        %v426 = vadd.f32 0.0, %v425
        %v427 = vpop.f32.mrf.mxu0
        %v428 = vadd.f32 0.0, %v427
        %429 = vmatmul.bf16.gmra.mxu0 %v365
        %v430 = vpop.f32.mrf.mxu0
        %v431 = vadd.f32 0.0, %v430
        %v432 = vpop.f32.mrf.mxu0
        %v433 = vadd.f32 0.0, %v432
        %434 = vmatmul.bf16.gmra.mxu0 %v368
        %v435 = vpop.f32.mrf.mxu0
        %v436 = vadd.f32 0.0, %v435
        %v437 = vpop.f32.mrf.mxu0
        %v438 = vadd.f32 0.0, %v437
        %439 = vmatmul.bf16.gmra.mxu0 %v371
        %v440 = vpop.f32.mrf.mxu0
        %v441 = vadd.f32 0.0, %v440
        %v442 = vpop.f32.mrf.mxu0
        %v443 = vadd.f32 0.0, %v442
        %444 = vmatmul.bf16.gmra.mxu0 %v374
        %v445 = vpop.f32.mrf.mxu0
        %v446 = vadd.f32 0.0, %v445
        %v447 = vpop.f32.mrf.mxu0
        %v448 = vadd.f32 0.0, %v447
        %449 = vmatmul.bf16.gmra.mxu0 %v377
        %v450 = vpop.f32.mrf.mxu0
        %v451 = vadd.f32 0.0, %v450
        %v452 = vpop.f32.mrf.mxu0
        %v453 = vadd.f32 0.0, %v452
        %454 = vmatmul.bf16.gmra.mxu0 %v380
        %v455 = vpop.f32.mrf.mxu0
        %v456 = vadd.f32 0.0, %v455
        %v457 = vpop.f32.mrf.mxu0
        %v458 = vadd.f32 0.0, %v457
        %459 = vmatmul.bf16.gmra.mxu0 %v383
        %v460 = vpop.f32.mrf.mxu0
        %v461 = vadd.f32 0.0, %v460
        %v462 = vpop.f32.mrf.mxu0
        %v463 = vadd.f32 0.0, %v462
        %464 = vmatmul.bf16.gmra.mxu0 %v386
        %v465 = vpop.f32.mrf.mxu0
        %v466 = vadd.f32 0.0, %v465
        %v467 = vpop.f32.mrf.mxu0
        %v468 = vadd.f32 0.0, %v467
        %469 = vmatmul.bf16.gmra.mxu0 %v389
        %v470 = vpop.f32.mrf.mxu0
        %v471 = vadd.f32 0.0, %v470
        %v472 = vpop.f32.mrf.mxu0
        %v473 = vadd.f32 0.0, %v472
        %474 = vmatmul.bf16.gmra.mxu0 %v392
        %v475 = vpop.f32.mrf.mxu0
        %v476 = vadd.f32 0.0, %v475
        %v477 = vpop.f32.mrf.mxu0
        %v478 = vadd.f32 0.0, %v477
        %479 = vmatmul.bf16.gmra.mxu0 %v395
        %v480 = vpop.f32.mrf.mxu0
        %v481 = vadd.f32 0.0, %v480
        %v482 = vpop.f32.mrf.mxu0
        %v483 = vadd.f32 0.0, %v482
        %484 = vmatmul.bf16.gmra.mxu0 %v398
        %v485 = vpop.f32.mrf.mxu0
        %v486 = vadd.f32 0.0, %v485
        %v487 = vpop.f32.mrf.mxu0
        %v488 = vadd.f32 0.0, %v487
        %489 = vmatmul.bf16.gmra.mxu0 %v401
        %v490 = vpop.f32.mrf.mxu0
        %v491 = vadd.f32 0.0, %v490
        %v492 = vpop.f32.mrf.mxu0
        %v493 = vadd.f32 0.0, %v492
        %494 = vmatmul.bf16.gmra.mxu0 %v404
        %v495 = vpop.f32.mrf.mxu0
        %v496 = vadd.f32 0.0, %v495
        %v497 = vpop.f32.mrf.mxu0
        %v498 = vadd.f32 0.0, %v497
        %499 = vmatmul.bf16.gmra.mxu0 %v407
        %v500 = vpop.f32.mrf.mxu0
        %v501 = vadd.f32 0.0, %v500
        %v502 = vpop.f32.mrf.mxu0
        %v503 = vadd.f32 0.0, %v502
        %504 = vdwg.mxu0
        %v505 = vld [vmem:[%s2] sm:$0x1]
        %v507 = vperm.slane %v505, 0
        %v509 = vmul.f32 %v426, %v507
        %v510 = vmul.f32 %v428, %v507
        %v511 = vmul.f32 %v431, %v507
        %v512 = vmul.f32 %v433, %v507
        %v513 = vmul.f32 %v436, %v507
        %v514 = vmul.f32 %v438, %v507
        %v515 = vmul.f32 %v441, %v507
        %v516 = vmul.f32 %v443, %v507
        %v517 = vmul.f32 %v446, %v507
        %v518 = vmul.f32 %v448, %v507
        %v519 = vmul.f32 %v451, %v507
        %v520 = vmul.f32 %v453, %v507
        %v521 = vmul.f32 %v456, %v507
        %v522 = vmul.f32 %v458, %v507
        %v523 = vmul.f32 %v461, %v507
        %v524 = vmul.f32 %v463, %v507
        %v525 = vmul.f32 %v466, %v507
        %v526 = vmul.f32 %v468, %v507
        %v527 = vmul.f32 %v471, %v507
        %v528 = vmul.f32 %v473, %v507
        %v529 = vmul.f32 %v476, %v507
        %v530 = vmul.f32 %v478, %v507
        %v531 = vmul.f32 %v481, %v507
        %v532 = vmul.f32 %v483, %v507
        %v533 = vmul.f32 %v486, %v507
        %v534 = vmul.f32 %v488, %v507
        %v535 = vmul.f32 %v491, %v507
        %v536 = vmul.f32 %v493, %v507
        %v537 = vmul.f32 %v496, %v507
        %v538 = vmul.f32 %v498, %v507
        %v539 = vmul.f32 %v501, %v507
        %v540 = vmul.f32 %v503, %v507
        %v541 = vld [vmem:[%s3] sm:$0x1]
        %v543 = vperm.slane %v541, 0
        %v545 = vadd.f32 %v509, %v543
        %v546 = vadd.f32 %v510, %v543
        %v547 = vadd.f32 %v511, %v543
        %v548 = vadd.f32 %v512, %v543
        %v549 = vadd.f32 %v513, %v543
        %v550 = vadd.f32 %v514, %v543
        %v551 = vadd.f32 %v515, %v543
        %v552 = vadd.f32 %v516, %v543
        %v553 = vadd.f32 %v517, %v543
        %v554 = vadd.f32 %v518, %v543
        %v555 = vadd.f32 %v519, %v543
        %v556 = vadd.f32 %v520, %v543
        %v557 = vadd.f32 %v521, %v543
        %v558 = vadd.f32 %v522, %v543
        %v559 = vadd.f32 %v523, %v543
        %v560 = vadd.f32 %v524, %v543
        %v561 = vadd.f32 %v525, %v543
        %v562 = vadd.f32 %v526, %v543
        %v563 = vadd.f32 %v527, %v543
        %v564 = vadd.f32 %v528, %v543
        %v565 = vadd.f32 %v529, %v543
        %v566 = vadd.f32 %v530, %v543
        %v567 = vadd.f32 %v531, %v543
        %v568 = vadd.f32 %v532, %v543
        %v569 = vadd.f32 %v533, %v543
        %v570 = vadd.f32 %v534, %v543
        %v571 = vadd.f32 %v535, %v543
        %v572 = vadd.f32 %v536, %v543
        %v573 = vadd.f32 %v537, %v543
        %v574 = vadd.f32 %v538, %v543
        %v575 = vadd.f32 %v539, %v543
        %v576 = vadd.f32 %v540, %v543
        %vm577 = vcmp.ge.f32.partialorder %v545, 0.0
        %vm578 = vcmp.ge.f32.partialorder %v546, 0.0
        %vm579 = vcmp.ge.f32.partialorder %v547, 0.0
        %vm580 = vcmp.ge.f32.partialorder %v548, 0.0
        %vm581 = vcmp.ge.f32.partialorder %v549, 0.0
        %vm582 = vcmp.ge.f32.partialorder %v550, 0.0
        %vm583 = vcmp.ge.f32.partialorder %v551, 0.0
        %vm584 = vcmp.ge.f32.partialorder %v552, 0.0
        %vm585 = vcmp.ge.f32.partialorder %v553, 0.0
        %vm586 = vcmp.ge.f32.partialorder %v554, 0.0
        %vm587 = vcmp.ge.f32.partialorder %v555, 0.0
        %vm588 = vcmp.ge.f32.partialorder %v556, 0.0
        %vm589 = vcmp.ge.f32.partialorder %v557, 0.0
        %vm590 = vcmp.ge.f32.partialorder %v558, 0.0
        %vm591 = vcmp.ge.f32.partialorder %v559, 0.0
        %vm592 = vcmp.ge.f32.partialorder %v560, 0.0
        %vm593 = vcmp.ge.f32.partialorder %v561, 0.0
        %vm594 = vcmp.ge.f32.partialorder %v562, 0.0
        %vm595 = vcmp.ge.f32.partialorder %v563, 0.0
        %vm596 = vcmp.ge.f32.partialorder %v564, 0.0
        %vm597 = vcmp.ge.f32.partialorder %v565, 0.0
        %vm598 = vcmp.ge.f32.partialorder %v566, 0.0
        %vm599 = vcmp.ge.f32.partialorder %v567, 0.0
        %vm600 = vcmp.ge.f32.partialorder %v568, 0.0
        %vm601 = vcmp.ge.f32.partialorder %v569, 0.0
        %vm602 = vcmp.ge.f32.partialorder %v570, 0.0
        %vm603 = vcmp.ge.f32.partialorder %v571, 0.0
        %vm604 = vcmp.ge.f32.partialorder %v572, 0.0
        %vm605 = vcmp.ge.f32.partialorder %v573, 0.0
        %vm606 = vcmp.ge.f32.partialorder %v574, 0.0
        %vm607 = vcmp.ge.f32.partialorder %v575, 0.0
        %vm608 = vcmp.ge.f32.partialorder %v576, 0.0
        %v609 = vmul.f32 %v545, 0.01
        %v610 = vmul.f32 %v546, 0.01
        %v611 = vmul.f32 %v547, 0.01
        %v612 = vmul.f32 %v548, 0.01
        %v613 = vmul.f32 %v549, 0.01
        %v614 = vmul.f32 %v550, 0.01
        %v615 = vmul.f32 %v551, 0.01
        %v616 = vmul.f32 %v552, 0.01
        %v617 = vmul.f32 %v553, 0.01
        %v618 = vmul.f32 %v554, 0.01
        %v619 = vmul.f32 %v555, 0.01
        %v620 = vmul.f32 %v556, 0.01
        %v621 = vmul.f32 %v557, 0.01
        %v622 = vmul.f32 %v558, 0.01
        %v623 = vmul.f32 %v559, 0.01
        %v624 = vmul.f32 %v560, 0.01
        %v625 = vmul.f32 %v561, 0.01
        %v626 = vmul.f32 %v562, 0.01
        %v627 = vmul.f32 %v563, 0.01
        %v628 = vmul.f32 %v564, 0.01
        %v629 = vmul.f32 %v565, 0.01
        %v630 = vmul.f32 %v566, 0.01
        %v631 = vmul.f32 %v567, 0.01
        %v632 = vmul.f32 %v568, 0.01
        %v633 = vmul.f32 %v569, 0.01
        %v634 = vmul.f32 %v570, 0.01
        %v635 = vmul.f32 %v571, 0.01
        %v636 = vmul.f32 %v572, 0.01
        %v637 = vmul.f32 %v573, 0.01
        %v638 = vmul.f32 %v574, 0.01
        %v639 = vmul.f32 %v575, 0.01
        %v640 = vmul.f32 %v576, 0.01
        %v641 = vsel %vm577, %v545, %v609
        %v642 = vsel %vm578, %v546, %v610
        %v643 = vsel %vm579, %v547, %v611
        %v644 = vsel %vm580, %v548, %v612
        %v645 = vsel %vm581, %v549, %v613
        %v646 = vsel %vm582, %v550, %v614
        %v647 = vsel %vm583, %v551, %v615
        %v648 = vsel %vm584, %v552, %v616
        %v649 = vsel %vm585, %v553, %v617
        %v650 = vsel %vm586, %v554, %v618
        %v651 = vsel %vm587, %v555, %v619
        %v652 = vsel %vm588, %v556, %v620
        %v653 = vsel %vm589, %v557, %v621
        %v654 = vsel %vm590, %v558, %v622
        %v655 = vsel %vm591, %v559, %v623
        %v656 = vsel %vm592, %v560, %v624
        %v657 = vsel %vm593, %v561, %v625
        %v658 = vsel %vm594, %v562, %v626
        %v659 = vsel %vm595, %v563, %v627
        %v660 = vsel %vm596, %v564, %v628
        %v661 = vsel %vm597, %v565, %v629
        %v662 = vsel %vm598, %v566, %v630
        %v663 = vsel %vm599, %v567, %v631
        %v664 = vsel %vm600, %v568, %v632
        %v665 = vsel %vm601, %v569, %v633
        %v666 = vsel %vm602, %v570, %v634
        %v667 = vsel %vm603, %v571, %v635
        %v668 = vsel %vm604, %v572, %v636
        %v669 = vsel %vm605, %v573, %v637
        %v670 = vsel %vm606, %v574, %v638
        %v671 = vsel %vm607, %v575, %v639
        %v672 = vsel %vm608, %v576, %v640
        %v673 = vpack.c.bf16 %v642, %v641
        %v674 = vpack.c.bf16 %v644, %v643
        %v675 = vpack.c.bf16 %v646, %v645
        %v676 = vpack.c.bf16 %v648, %v647
        %v677 = vpack.c.bf16 %v650, %v649
        %v678 = vpack.c.bf16 %v652, %v651
        %v679 = vpack.c.bf16 %v654, %v653
        %v680 = vpack.c.bf16 %v656, %v655
        %v681 = vpack.c.bf16 %v658, %v657
        %v682 = vpack.c.bf16 %v660, %v659
        %v683 = vpack.c.bf16 %v662, %v661
        %v684 = vpack.c.bf16 %v664, %v663
        %v685 = vpack.c.bf16 %v666, %v665
        %v686 = vpack.c.bf16 %v668, %v667
        %v687 = vpack.c.bf16 %v670, %v669
        %v688 = vpack.c.bf16 %v672, %v671
        %v689 = vld [vmem:[%s4] sm:$0xf]
        %v690 = vld [vmem:[%s4 + $0x4] sm:$0xf]
        %v691 = vld [vmem:[%s4 + $0x8] sm:$0xf]
        %v692 = vld [vmem:[%s4 + $0xc] sm:$0xf]
        %v693 = vld [vmem:[#allocation2] sm:$0x1]
        %v695 = vperm.slane %v693, 0
        %v701 = vunpack.c.l.b16 %v689
        %v702 = vunpack.c.l.b16 %v690
        %v703 = vunpack.c.l.b16 %v691
        %v704 = vunpack.c.l.b16 %v692
        %v705 = vpack.c.b16 %v702, %v701
        %v706 = vpack.c.b16 %v704, %v703
        %vm709 = vcmask 261120
        %v711 = vsel %vm709, %v673, 0
        %v714 = vsel %vm709, %v674, 0
        %v717 = vsel %vm709, %v675, 0
        %v720 = vsel %vm709, %v676, 0
        %v723 = vsel %vm709, %v677, 0
        %v726 = vsel %vm709, %v678, 0
        %v729 = vsel %vm709, %v679, 0
        %v732 = vsel %vm709, %v680, 0
        %v735 = vsel %vm709, %v681, 0
        %v738 = vsel %vm709, %v682, 0
        %v741 = vsel %vm709, %v683, 0
        %v744 = vsel %vm709, %v684, 0
        %v747 = vsel %vm709, %v685, 0
        %v750 = vsel %vm709, %v686, 0
        %v753 = vsel %vm709, %v687, 0
        %v756 = vsel %vm709, %v688, 0
        %758 = vmatpush.bf16.msra.mxu0 0
        %759 = vmatpush.bf16.msra.mxu0 0
        %760 = vmatpush.bf16.msra.mxu0 0
        %761 = vmatpush.bf16.msra.mxu0 0
        %762 = vmatpush.bf16.msra.mxu0 0
        %763 = vmatpush.bf16.msra.mxu0 0
        %764 = vmatpush.bf16.msra.mxu0 %v706
        %765 = vmatpush.bf16.msra.mxu0 %v705
        %766 = vmatmul.bf16.gmra.mxu0 %v711
        %v767 = vpop.f32.mrf.mxu0
        %v768 = vadd.f32 %v695, %v767
        %v769 = vpop.f32.mrf.mxu0
        %v770 = vadd.f32 %v695, %v769
        %771 = vmatmul.bf16.gmra.mxu0 %v714
        %v772 = vpop.f32.mrf.mxu0
        %v773 = vadd.f32 %v695, %v772
        %v774 = vpop.f32.mrf.mxu0
        %v775 = vadd.f32 %v695, %v774
        %776 = vmatmul.bf16.gmra.mxu0 %v717
        %v777 = vpop.f32.mrf.mxu0
        %v778 = vadd.f32 %v695, %v777
        %v779 = vpop.f32.mrf.mxu0
        %v780 = vadd.f32 %v695, %v779
        %781 = vmatmul.bf16.gmra.mxu0 %v720
        %v782 = vpop.f32.mrf.mxu0
        %v783 = vadd.f32 %v695, %v782
        %v784 = vpop.f32.mrf.mxu0
        %v785 = vadd.f32 %v695, %v784
        %786 = vmatmul.bf16.gmra.mxu0 %v723
        %v787 = vpop.f32.mrf.mxu0
        %v788 = vadd.f32 %v695, %v787
        %v789 = vpop.f32.mrf.mxu0
        %v790 = vadd.f32 %v695, %v789
        %791 = vmatmul.bf16.gmra.mxu0 %v726
        %v792 = vpop.f32.mrf.mxu0
        %v793 = vadd.f32 %v695, %v792
        %v794 = vpop.f32.mrf.mxu0
        %v795 = vadd.f32 %v695, %v794
        %796 = vmatmul.bf16.gmra.mxu0 %v729
        %v797 = vpop.f32.mrf.mxu0
        %v798 = vadd.f32 %v695, %v797
        %v799 = vpop.f32.mrf.mxu0
        %v800 = vadd.f32 %v695, %v799
        %801 = vmatmul.bf16.gmra.mxu0 %v732
        %v802 = vpop.f32.mrf.mxu0
        %v803 = vadd.f32 %v695, %v802
        %v804 = vpop.f32.mrf.mxu0
        %v805 = vadd.f32 %v695, %v804
        %806 = vmatmul.bf16.gmra.mxu0 %v735
        %v807 = vpop.f32.mrf.mxu0
        %v808 = vadd.f32 %v695, %v807
        %v809 = vpop.f32.mrf.mxu0
        %v810 = vadd.f32 %v695, %v809
        %811 = vmatmul.bf16.gmra.mxu0 %v738
        %v812 = vpop.f32.mrf.mxu0
        %v813 = vadd.f32 %v695, %v812
        %v814 = vpop.f32.mrf.mxu0
        %v815 = vadd.f32 %v695, %v814
        %816 = vmatmul.bf16.gmra.mxu0 %v741
        %v817 = vpop.f32.mrf.mxu0
        %v818 = vadd.f32 %v695, %v817
        %v819 = vpop.f32.mrf.mxu0
        %v820 = vadd.f32 %v695, %v819
        %821 = vmatmul.bf16.gmra.mxu0 %v744
        %v822 = vpop.f32.mrf.mxu0
        %v823 = vadd.f32 %v695, %v822
        %v824 = vpop.f32.mrf.mxu0
        %v825 = vadd.f32 %v695, %v824
        %826 = vmatmul.bf16.gmra.mxu0 %v747
        %v827 = vpop.f32.mrf.mxu0
        %v828 = vadd.f32 %v695, %v827
        %v829 = vpop.f32.mrf.mxu0
        %v830 = vadd.f32 %v695, %v829
        %831 = vmatmul.bf16.gmra.mxu0 %v750
        %v832 = vpop.f32.mrf.mxu0
        %v833 = vadd.f32 %v695, %v832
        %v834 = vpop.f32.mrf.mxu0
        %v835 = vadd.f32 %v695, %v834
        %836 = vmatmul.bf16.gmra.mxu0 %v753
        %v837 = vpop.f32.mrf.mxu0
        %v838 = vadd.f32 %v695, %v837
        %v839 = vpop.f32.mrf.mxu0
        %v840 = vadd.f32 %v695, %v839
        %841 = vmatmul.bf16.gmra.mxu0 %v756
        %v842 = vpop.f32.mrf.mxu0
        %v843 = vadd.f32 %v695, %v842
        %v844 = vpop.f32.mrf.mxu0
        %v845 = vadd.f32 %v695, %v844
        %846 = vdwg.mxu0
        %vm847 = vcmask 7168
        %848 = vst.msk [vmem:[%s255] sm:$0xff] %vm847, %v768
        %849 = vst.msk [vmem:[%s255 + $0x8] sm:$0xff] %vm847, %v770
        %850 = vst.msk [vmem:[%s255 + $0x10] sm:$0xff] %vm847, %v773
        %851 = vst.msk [vmem:[%s255 + $0x18] sm:$0xff] %vm847, %v775
        %852 = vst.msk [vmem:[%s255 + $0x20] sm:$0xff] %vm847, %v778
        %853 = vst.msk [vmem:[%s255 + $0x28] sm:$0xff] %vm847, %v780
        %854 = vst.msk [vmem:[%s255 + $0x30] sm:$0xff] %vm847, %v783
        %855 = vst.msk [vmem:[%s255 + $0x38] sm:$0xff] %vm847, %v785
        %856 = vst.msk [vmem:[%s255 + $0x40] sm:$0xff] %vm847, %v788
        %857 = vst.msk [vmem:[%s255 + $0x48] sm:$0xff] %vm847, %v790
        %858 = vst.msk [vmem:[%s255 + $0x50] sm:$0xff] %vm847, %v793
        %859 = vst.msk [vmem:[%s255 + $0x58] sm:$0xff] %vm847, %v795
        %860 = vst.msk [vmem:[%s255 + $0x60] sm:$0xff] %vm847, %v798
        %861 = vst.msk [vmem:[%s255 + $0x68] sm:$0xff] %vm847, %v800
        %862 = vst.msk [vmem:[%s255 + $0x70] sm:$0xff] %vm847, %v803
        %863 = vst.msk [vmem:[%s255 + $0x78] sm:$0xff] %vm847, %v805
        %864 = vst.msk [vmem:[%s255 + $0x80] sm:$0xff] %vm847, %v808
        %865 = vst.msk [vmem:[%s255 + $0x88] sm:$0xff] %vm847, %v810
        %866 = vst.msk [vmem:[%s255 + $0x90] sm:$0xff] %vm847, %v813
        %867 = vst.msk [vmem:[%s255 + $0x98] sm:$0xff] %vm847, %v815
        %868 = vst.msk [vmem:[%s255 + $0xa0] sm:$0xff] %vm847, %v818
        %869 = vst.msk [vmem:[%s255 + $0xa8] sm:$0xff] %vm847, %v820
        %870 = vst.msk [vmem:[%s255 + $0xb0] sm:$0xff] %vm847, %v823
        %871 = vst.msk [vmem:[%s255 + $0xb8] sm:$0xff] %vm847, %v825
        %872 = vst.msk [vmem:[%s255 + $0xc0] sm:$0xff] %vm847, %v828
        %873 = vst.msk [vmem:[%s255 + $0xc8] sm:$0xff] %vm847, %v830
        %874 = vst.msk [vmem:[%s255 + $0xd0] sm:$0xff] %vm847, %v833
        %875 = vst.msk [vmem:[%s255 + $0xd8] sm:$0xff] %vm847, %v835
        %876 = vst.msk [vmem:[%s255 + $0xe0] sm:$0xff] %vm847, %v838
        %877 = vst.msk [vmem:[%s255 + $0xe8] sm:$0xff] %vm847, %v840
        %878 = vst.msk [vmem:[%s255 + $0xf0] sm:$0xff] %vm847, %v843
        %879 = vst.msk [vmem:[%s255 + $0xf8] sm:$0xff] %vm847, %v845
        %s880 = sand.u32 %s158, 1
        %s881 = sand.u32 %s158, 1
        %s882 = smul.addr %s881, 256
        %s883 = scalar_lea.vmem [#allocation3], %s882
        // Predicated region
        $region45: #{_forward_mlp.1} parent=43 // pred_check
          %p884 = pneg %p168
        $region46: #{_forward_mlp.1} parent=43 // pred_check_branch
          %886 = sbr.rel (%p884) target = $region48
        $region47: #{_forward_mlp.1} parent=43 // pred_region
          %s887 = smul.u32 32, %s19
          %s888 = ssub.s32 75, %s887
          %p889 = scmp.lt.s32.totalorder %s888, 32
          %s890 = scalar_select %p889, %s888, 32
          %s891 = smul.u32 8, %s890
          %p892 = scmp.ne.s32.totalorder 0, %s891
          %s893 = smul.addr %s887, 8
          %s894 = scalar_lea.vmem %s6, %s893
          // Predicated region
          $region49: #{_forward_mlp.1} parent=47 // pred_check
            %p895 = pneg %p892
          $region50: #{_forward_mlp.1} parent=47 // pred_check_branch
            %897 = sbr.rel (%p895) target = $region52
          $region51: #{_forward_mlp.1} parent=47 // pred_region
            // Predicated region
            $region53: #{_forward_mlp.1} parent=51 // pred_check
              _
            $region54: #{_forward_mlp.1} parent=51 // pred_check_branch
              %899 = sbr.rel (0) target = $region56
            $region55: #{_forward_mlp.1} parent=51 // pred_region
              // Predicated region
              $region75: #{_forward_mlp.1} parent=55 // pred_check
                _
              $region76: #{_forward_mlp.1} parent=55 // pred_check_branch
                %1011 = sbr.rel (0) target = $region78
              $region77: #{_forward_mlp.1} parent=55 // pred_region
                %s1012 = sshrl.u32 %s890, 5
                // While loop
                $region79: #{_forward_mlp.1} parent=77 // loop_pre_header
                  _
                $region80: #{_forward_mlp.1} parent=77 // loop_header
                  %s1014 = sphi 0, %s1016
                  %p1015 = scmp.ge.s32.totalorder %s1014, %s1012
                  %s1019 = sphi 0, %s1088
                  %s1020 = sphi %s883, %s1091
                  %s1021 = sphi %s894, %s1092
                $region81: #{_forward_mlp.1} parent=77 // loop_header_branch
                  %1018 = sbr.rel (%p1015) target = $region85
                $region82: #{_forward_mlp.1} parent=77 // loop_body
                  %v1022 = vld [vmem:[%s1020] sm:$0xff]
                  %1023 = vst [vmem:[%s1021] sm:$0xff] %v1022
                  %v1024 = vld [vmem:[%s1020 + $0x8] sm:$0xff]
                  %1025 = vst [vmem:[%s1021 + $0x8] sm:$0xff] %v1024
                  %v1026 = vld [vmem:[%s1020 + $0x10] sm:$0xff]
                  %1027 = vst [vmem:[%s1021 + $0x10] sm:$0xff] %v1026
                  %v1028 = vld [vmem:[%s1020 + $0x18] sm:$0xff]
                  %1029 = vst [vmem:[%s1021 + $0x18] sm:$0xff] %v1028
                  %v1030 = vld [vmem:[%s1020 + $0x20] sm:$0xff]
                  %1031 = vst [vmem:[%s1021 + $0x20] sm:$0xff] %v1030
                  %v1032 = vld [vmem:[%s1020 + $0x28] sm:$0xff]
                  %1033 = vst [vmem:[%s1021 + $0x28] sm:$0xff] %v1032
                  %v1034 = vld [vmem:[%s1020 + $0x30] sm:$0xff]
                  %1035 = vst [vmem:[%s1021 + $0x30] sm:$0xff] %v1034
                  %v1036 = vld [vmem:[%s1020 + $0x38] sm:$0xff]
                  %1037 = vst [vmem:[%s1021 + $0x38] sm:$0xff] %v1036
                  %v1038 = vld [vmem:[%s1020 + $0x40] sm:$0xff]
                  %1039 = vst [vmem:[%s1021 + $0x40] sm:$0xff] %v1038
                  %v1040 = vld [vmem:[%s1020 + $0x48] sm:$0xff]
                  %1041 = vst [vmem:[%s1021 + $0x48] sm:$0xff] %v1040
                  %v1042 = vld [vmem:[%s1020 + $0x50] sm:$0xff]
                  %1043 = vst [vmem:[%s1021 + $0x50] sm:$0xff] %v1042
                  %v1044 = vld [vmem:[%s1020 + $0x58] sm:$0xff]
                  %1045 = vst [vmem:[%s1021 + $0x58] sm:$0xff] %v1044
                  %v1046 = vld [vmem:[%s1020 + $0x60] sm:$0xff]
                  %1047 = vst [vmem:[%s1021 + $0x60] sm:$0xff] %v1046
                  %v1048 = vld [vmem:[%s1020 + $0x68] sm:$0xff]
                  %1049 = vst [vmem:[%s1021 + $0x68] sm:$0xff] %v1048
                  %v1050 = vld [vmem:[%s1020 + $0x70] sm:$0xff]
                  %1051 = vst [vmem:[%s1021 + $0x70] sm:$0xff] %v1050
                  %v1052 = vld [vmem:[%s1020 + $0x78] sm:$0xff]
                  %1053 = vst [vmem:[%s1021 + $0x78] sm:$0xff] %v1052
                  %v1054 = vld [vmem:[%s1020 + $0x80] sm:$0xff]
                  %1055 = vst [vmem:[%s1021 + $0x80] sm:$0xff] %v1054
                  %v1056 = vld [vmem:[%s1020 + $0x88] sm:$0xff]
                  %1057 = vst [vmem:[%s1021 + $0x88] sm:$0xff] %v1056
                  %v1058 = vld [vmem:[%s1020 + $0x90] sm:$0xff]
                  %1059 = vst [vmem:[%s1021 + $0x90] sm:$0xff] %v1058
                  %v1060 = vld [vmem:[%s1020 + $0x98] sm:$0xff]
                  %1061 = vst [vmem:[%s1021 + $0x98] sm:$0xff] %v1060
                  %v1062 = vld [vmem:[%s1020 + $0xa0] sm:$0xff]
                  %1063 = vst [vmem:[%s1021 + $0xa0] sm:$0xff] %v1062
                  %v1064 = vld [vmem:[%s1020 + $0xa8] sm:$0xff]
                  %1065 = vst [vmem:[%s1021 + $0xa8] sm:$0xff] %v1064
                  %v1066 = vld [vmem:[%s1020 + $0xb0] sm:$0xff]
                  %1067 = vst [vmem:[%s1021 + $0xb0] sm:$0xff] %v1066
                  %v1068 = vld [vmem:[%s1020 + $0xb8] sm:$0xff]
                  %1069 = vst [vmem:[%s1021 + $0xb8] sm:$0xff] %v1068
                  %v1070 = vld [vmem:[%s1020 + $0xc0] sm:$0xff]
                  %1071 = vst [vmem:[%s1021 + $0xc0] sm:$0xff] %v1070
                  %v1072 = vld [vmem:[%s1020 + $0xc8] sm:$0xff]
                  %1073 = vst [vmem:[%s1021 + $0xc8] sm:$0xff] %v1072
                  %v1074 = vld [vmem:[%s1020 + $0xd0] sm:$0xff]
                  %1075 = vst [vmem:[%s1021 + $0xd0] sm:$0xff] %v1074
                  %v1076 = vld [vmem:[%s1020 + $0xd8] sm:$0xff]
                  %1077 = vst [vmem:[%s1021 + $0xd8] sm:$0xff] %v1076
                  %v1078 = vld [vmem:[%s1020 + $0xe0] sm:$0xff]
                  %1079 = vst [vmem:[%s1021 + $0xe0] sm:$0xff] %v1078
                  %v1080 = vld [vmem:[%s1020 + $0xe8] sm:$0xff]
                  %1081 = vst [vmem:[%s1021 + $0xe8] sm:$0xff] %v1080
                  %v1082 = vld [vmem:[%s1020 + $0xf0] sm:$0xff]
                  %1083 = vst [vmem:[%s1021 + $0xf0] sm:$0xff] %v1082
                  %v1084 = vld [vmem:[%s1020 + $0xf8] sm:$0xff]
                  %1085 = vst [vmem:[%s1021 + $0xf8] sm:$0xff] %v1084
                  %s1086 = sadd.s32 1, %s1019
                  %p1087 = scmp.ge.s32.totalorder %s1086, %s1012
                  %s1088 = scalar_select %p1087, 0, %s1086
                  %s1089 = smul.u32 %s1088, 256
                  %s1090 = smul.u32 %s1088, 256
                  %s1091 = scalar_lea.vmem %s883, %s1089 [#allocation3]
                  %s1092 = scalar_lea.vmem %s894, %s1090
                $region83: #{_forward_mlp.1} parent=77 // loop_footer
                  %s1016 = sadd.s32 %s1014, 1
                $region84: #{_forward_mlp.1} parent=77 // loop_footer_branch
                  %1013 = sbr.rel target = $region80
                $region85: #{_forward_mlp.1} parent=77 // loop_exit
                  _
                %s1093 = sshrl.u32 %s890, 5
                %s1094 = sand.u32 %s890, 31
                %s1095 = smul.u32 %s1093, 32
                %s1096 = smul.u32 8, %s1095
                %s1097 = scalar_lea.vmem %s883, %s1096 [#allocation3]
                %s1098 = smul.u32 8, %s1095
                %s1099 = scalar_lea.vmem %s894, %s1098
                // While loop
                $region86: #{_forward_mlp.1} parent=77 // loop_pre_header
                  _
                $region87: #{_forward_mlp.1} parent=77 // loop_header
                  %s1101 = sphi 0, %s1103
                  %p1102 = scmp.ge.s32.totalorder %s1101, %s1094
                  %s1106 = sphi 0, %s1113
                  %s1107 = sphi %s1097, %s1116
                  %s1108 = sphi %s1099, %s1117
                $region88: #{_forward_mlp.1} parent=77 // loop_header_branch
                  %1105 = sbr.rel (%p1102) target = $region92
                $region89: #{_forward_mlp.1} parent=77 // loop_body
                  %v1109 = vld [vmem:[%s1107] sm:$0xff]
                  %1110 = vst [vmem:[%s1108] sm:$0xff] %v1109
                  %s1111 = sadd.s32 1, %s1106
                  %p1112 = scmp.ge.s32.totalorder %s1111, %s1094
                  %s1113 = scalar_select %p1112, 0, %s1111
                  %s1114 = smul.u32 %s1113, 8
                  %s1115 = smul.u32 %s1113, 8
                  %s1116 = scalar_lea.vmem %s1097, %s1114 [#allocation3]
                  %s1117 = scalar_lea.vmem %s1099, %s1115
                $region90: #{_forward_mlp.1} parent=77 // loop_footer
                  %s1103 = sadd.s32 %s1101, 1
                $region91: #{_forward_mlp.1} parent=77 // loop_footer_branch
                  %1100 = sbr.rel target = $region87
                $region92: #{_forward_mlp.1} parent=77 // loop_exit
                  _
              $region78: #{_forward_mlp.1} parent=55 // pred_fallthru
                _
              // Predicated region
              $region93: #{_forward_mlp.1} parent=55 // pred_check
                _
              $region94: #{_forward_mlp.1} parent=55 // pred_check_branch
                %1119 = sbr.rel target = $region96
              $region95: #{_forward_mlp.1} parent=55 // pred_region
                _
              $region96: #{_forward_mlp.1} parent=55 // pred_fallthru
                _
            $region56: #{_forward_mlp.1} parent=51 // pred_fallthru
              _
            // Predicated region
            $region57: #{_forward_mlp.1} parent=51 // pred_check
              _
            $region58: #{_forward_mlp.1} parent=51 // pred_check_branch
              %901 = sbr.rel target = $region60
            $region59: #{_forward_mlp.1} parent=51 // pred_region
              %s903 = ssub.s32 256, 1
              %s904 = sshrl.u32 %s890, 5
              // While loop
              $region61: #{_forward_mlp.1} parent=59 // loop_pre_header
                _
              $region62: #{_forward_mlp.1} parent=59 // loop_header
                %s906 = sphi 0, %s908
                %p907 = scmp.ge.s32.totalorder %s906, %s904
                %s911 = sphi 0, %s980
                %s912 = sphi %s883, %s983
                %s913 = sphi %s894, %s984
              $region63: #{_forward_mlp.1} parent=59 // loop_header_branch
                %910 = sbr.rel (%p907) target = $region67
              $region64: #{_forward_mlp.1} parent=59 // loop_body
                %v914 = vld [vmem:[%s912] sm:%s903]
                %915 = vst [vmem:[%s913] sm:%s903] %v914
                %v916 = vld [vmem:[%s912 + $0x8] sm:%s903]
                %917 = vst [vmem:[%s913 + $0x8] sm:%s903] %v916
                %v918 = vld [vmem:[%s912 + $0x10] sm:%s903]
                %919 = vst [vmem:[%s913 + $0x10] sm:%s903] %v918
                %v920 = vld [vmem:[%s912 + $0x18] sm:%s903]
                %921 = vst [vmem:[%s913 + $0x18] sm:%s903] %v920
                %v922 = vld [vmem:[%s912 + $0x20] sm:%s903]
                %923 = vst [vmem:[%s913 + $0x20] sm:%s903] %v922
                %v924 = vld [vmem:[%s912 + $0x28] sm:%s903]
                %925 = vst [vmem:[%s913 + $0x28] sm:%s903] %v924
                %v926 = vld [vmem:[%s912 + $0x30] sm:%s903]
                %927 = vst [vmem:[%s913 + $0x30] sm:%s903] %v926
                %v928 = vld [vmem:[%s912 + $0x38] sm:%s903]
                %929 = vst [vmem:[%s913 + $0x38] sm:%s903] %v928
                %v930 = vld [vmem:[%s912 + $0x40] sm:%s903]
                %931 = vst [vmem:[%s913 + $0x40] sm:%s903] %v930
                %v932 = vld [vmem:[%s912 + $0x48] sm:%s903]
                %933 = vst [vmem:[%s913 + $0x48] sm:%s903] %v932
                %v934 = vld [vmem:[%s912 + $0x50] sm:%s903]
                %935 = vst [vmem:[%s913 + $0x50] sm:%s903] %v934
                %v936 = vld [vmem:[%s912 + $0x58] sm:%s903]
                %937 = vst [vmem:[%s913 + $0x58] sm:%s903] %v936
                %v938 = vld [vmem:[%s912 + $0x60] sm:%s903]
                %939 = vst [vmem:[%s913 + $0x60] sm:%s903] %v938
                %v940 = vld [vmem:[%s912 + $0x68] sm:%s903]
                %941 = vst [vmem:[%s913 + $0x68] sm:%s903] %v940
                %v942 = vld [vmem:[%s912 + $0x70] sm:%s903]
                %943 = vst [vmem:[%s913 + $0x70] sm:%s903] %v942
                %v944 = vld [vmem:[%s912 + $0x78] sm:%s903]
                %945 = vst [vmem:[%s913 + $0x78] sm:%s903] %v944
                %v946 = vld [vmem:[%s912 + $0x80] sm:%s903]
                %947 = vst [vmem:[%s913 + $0x80] sm:%s903] %v946
                %v948 = vld [vmem:[%s912 + $0x88] sm:%s903]
                %949 = vst [vmem:[%s913 + $0x88] sm:%s903] %v948
                %v950 = vld [vmem:[%s912 + $0x90] sm:%s903]
                %951 = vst [vmem:[%s913 + $0x90] sm:%s903] %v950
                %v952 = vld [vmem:[%s912 + $0x98] sm:%s903]
                %953 = vst [vmem:[%s913 + $0x98] sm:%s903] %v952
                %v954 = vld [vmem:[%s912 + $0xa0] sm:%s903]
                %955 = vst [vmem:[%s913 + $0xa0] sm:%s903] %v954
                %v956 = vld [vmem:[%s912 + $0xa8] sm:%s903]
                %957 = vst [vmem:[%s913 + $0xa8] sm:%s903] %v956
                %v958 = vld [vmem:[%s912 + $0xb0] sm:%s903]
                %959 = vst [vmem:[%s913 + $0xb0] sm:%s903] %v958
                %v960 = vld [vmem:[%s912 + $0xb8] sm:%s903]
                %961 = vst [vmem:[%s913 + $0xb8] sm:%s903] %v960
                %v962 = vld [vmem:[%s912 + $0xc0] sm:%s903]
                %963 = vst [vmem:[%s913 + $0xc0] sm:%s903] %v962
                %v964 = vld [vmem:[%s912 + $0xc8] sm:%s903]
                %965 = vst [vmem:[%s913 + $0xc8] sm:%s903] %v964
                %v966 = vld [vmem:[%s912 + $0xd0] sm:%s903]
                %967 = vst [vmem:[%s913 + $0xd0] sm:%s903] %v966
                %v968 = vld [vmem:[%s912 + $0xd8] sm:%s903]
                %969 = vst [vmem:[%s913 + $0xd8] sm:%s903] %v968
                %v970 = vld [vmem:[%s912 + $0xe0] sm:%s903]
                %971 = vst [vmem:[%s913 + $0xe0] sm:%s903] %v970
                %v972 = vld [vmem:[%s912 + $0xe8] sm:%s903]
                %973 = vst [vmem:[%s913 + $0xe8] sm:%s903] %v972
                %v974 = vld [vmem:[%s912 + $0xf0] sm:%s903]
                %975 = vst [vmem:[%s913 + $0xf0] sm:%s903] %v974
                %v976 = vld [vmem:[%s912 + $0xf8] sm:%s903]
                %977 = vst [vmem:[%s913 + $0xf8] sm:%s903] %v976
                %s978 = sadd.s32 1, %s911
                %p979 = scmp.ge.s32.totalorder %s978, %s904
                %s980 = scalar_select %p979, 0, %s978
                %s981 = smul.u32 %s980, 256
                %s982 = smul.u32 %s980, 256
                %s983 = scalar_lea.vmem %s883, %s981 [#allocation3]
                %s984 = scalar_lea.vmem %s894, %s982
              $region65: #{_forward_mlp.1} parent=59 // loop_footer
                %s908 = sadd.s32 %s906, 1
              $region66: #{_forward_mlp.1} parent=59 // loop_footer_branch
                %905 = sbr.rel target = $region62
              $region67: #{_forward_mlp.1} parent=59 // loop_exit
                _
              %s985 = sshrl.u32 %s890, 5
              %s986 = sand.u32 %s890, 31
              %s987 = smul.u32 %s985, 32
              %s988 = smul.u32 8, %s987
              %s989 = scalar_lea.vmem %s883, %s988 [#allocation3]
              %s990 = smul.u32 8, %s987
              %s991 = scalar_lea.vmem %s894, %s990
              // While loop
              $region68: #{_forward_mlp.1} parent=59 // loop_pre_header
                _
              $region69: #{_forward_mlp.1} parent=59 // loop_header
                %s993 = sphi 0, %s995
                %p994 = scmp.ge.s32.totalorder %s993, %s986
                %s998 = sphi 0, %s1005
                %s999 = sphi %s989, %s1008
                %s1000 = sphi %s991, %s1009
              $region70: #{_forward_mlp.1} parent=59 // loop_header_branch
                %997 = sbr.rel (%p994) target = $region74
              $region71: #{_forward_mlp.1} parent=59 // loop_body
                %v1001 = vld [vmem:[%s999] sm:%s903]
                %1002 = vst [vmem:[%s1000] sm:%s903] %v1001
                %s1003 = sadd.s32 1, %s998
                %p1004 = scmp.ge.s32.totalorder %s1003, %s986
                %s1005 = scalar_select %p1004, 0, %s1003
                %s1006 = smul.u32 %s1005, 8
                %s1007 = smul.u32 %s1005, 8
                %s1008 = scalar_lea.vmem %s989, %s1006 [#allocation3]
                %s1009 = scalar_lea.vmem %s991, %s1007
              $region72: #{_forward_mlp.1} parent=59 // loop_footer
                %s995 = sadd.s32 %s993, 1
              $region73: #{_forward_mlp.1} parent=59 // loop_footer_branch
                %992 = sbr.rel target = $region69
              $region74: #{_forward_mlp.1} parent=59 // loop_exit
                _
            $region60: #{_forward_mlp.1} parent=51 // pred_fallthru
              _
          $region52: #{_forward_mlp.1} parent=47 // pred_fallthru
            _
          %1120 = vnop
        $region48: #{_forward_mlp.1} parent=43 // pred_fallthru
          _
      $region44: #{_forward_mlp.1} parent=5 // pred_fallthru
        _
      %p1121 = scmp.le.s32.totalorder 2, %s14
      // Predicated region
      $region97: #{_forward_mlp.1} parent=5 // pred_check
        %p1122 = pneg %p1121
      $region98: #{_forward_mlp.1} parent=5 // pred_check_branch
        %1124 = sbr.rel (%p1122) target = $region100
      $region99: #{_forward_mlp.1} parent=5 // pred_region
        %s1125 = ssub.s32 %s14, 2
        // Predicated region
        $region101: #{_forward_mlp.1} parent=99 // pred_check
          %p1126 = pneg %p174
        $region102: #{_forward_mlp.1} parent=99 // pred_check_branch
          %1128 = sbr.rel (%p1126) target = $region104
        $region103: #{_forward_mlp.1} parent=99 // pred_region
          %s1129 = sand.u32 %s159, 1
          %s1130 = sand.u32 %s159, 1
          %s1131 = smul.addr %s1130, 256
          %s1132 = scalar_lea.vmem [#allocation3], %s1131
        $region104: #{_forward_mlp.1} parent=99 // pred_fallthru
          _
      $region100: #{_forward_mlp.1} parent=5 // pred_fallthru
        _
    $region6: #{_forward_mlp.1} parent=1 // loop_footer
      %s18 = sadd.s32 1, %s14
    $region7: #{_forward_mlp.1} parent=1 // loop_footer_branch
      %13 = sbr.rel target = $region3
    $region8: #{_forward_mlp.1} parent=1 // loop_exit
      _

</llo_original>
